<compile_context>
chip_gen: v7x
topology: tpu7x:2x2x1
jax: 0.10.0
libtpu: 0.0.40
codegen_flags: <defaults>
</compile_context>

<pallas_src>
import jax
import jax.numpy as jnp
from jax.experimental import pallas as pl
from jax.experimental.pallas import tpu as pltpu

_HIGHEST = jax.lax.Precision.HIGHEST


def _round_up(x, m):
    return (x + m - 1) // m * m


# ----------------------------------------------------------------------------
# Fused kernel: multihot build (VPU) + single fused-table dot (MXU) + bias.
# ----------------------------------------------------------------------------
def _encoder_kernel(idx_ref, tab_ref, b_ref, o_ref):
    # idx_ref : [TMp, 4*R] int32  combined (slot, category, id) index per column
    # tab_ref : [K_pad, Wpad] f32 block-diagonal fused table (emb @ W.T), resident
    # b_ref   : [1, Wpad]    f32  tiled bias, resident
    # o_ref   : [TMp, Wpad]  f32  lane-dense output tile
    idx = idx_ref[...]
    tab = tab_ref[...]
    rows, ncol = idx.shape
    K = tab.shape[0]

    # Multi-hot selection matrix: exactly one 1 per (slot, category) column.
    iota = jax.lax.broadcasted_iota(jnp.int32, (rows, K), 1)
    mh = (idx[:, 0:1] == iota).astype(jnp.float32)
    for c in range(1, ncol):
        mh = mh + (idx[:, c:c + 1] == iota).astype(jnp.float32)

    # Gather + concat + linear all folded into one MXU dot (exact: 0/1 lhs).
    y = jnp.dot(mh, tab, precision=_HIGHEST, preferred_element_type=jnp.float32)
    o_ref[...] = (y + b_ref[...]).astype(o_ref.dtype)


# ----------------------------------------------------------------------------
# Encoder forward
# ----------------------------------------------------------------------------
def encoder_forward(params, tokens, notes, genres, singers, *, logical_tile_rows=8192):
    tabs = (params["token_emb"], params["note_emb"],
            params["genre_emb"], params["singer_emb"])
    w = params["linear_w"]                       # [E, E]  (out_features, in_features)
    b = params["linear_b"]                       # [E]

    B, T = tokens.shape
    E = w.shape[0]
    M = B * T

    vocab = [int(t.shape[0]) for t in tabs]
    V_total = sum(vocab)

    # Pack R consecutive logical rows into one 128-lane-dense output row.
    R = 128 // E if (E < 128 and 128 % E == 0) else 1
    Wout = R * E
    Wpad = _round_up(Wout, 128)                  # lane-dense (unmasked) stores for any E
    K_pad = _round_up(R * V_total, 128)

    # ---- wrapper-side constants (tiny, O(V_total * E^2)) ---------------------
    # Fold the linear into the embedding tables: fused_c = tab_c @ W[:, slice_c].T
    fused = []
    col = 0
    for tab in tabs:
        emb = tab.shape[1]
        fused.append(jnp.einsum("ve,oe->vo", tab.astype(jnp.float32),
                                w[:, col:col + emb], precision=_HIGHEST))
        col += emb
    fused_cat = jnp.concatenate(fused, axis=0)                       # [V_total, E]

    # Block-diagonal layout over the R packed slots, zero-padded lane-dense.
    big = jnp.zeros((K_pad, Wpad), jnp.float32)
    for j in range(R):
        big = big.at[j * V_total:(j + 1) * V_total, j * E:(j + 1) * E].set(fused_cat)

    bias = jnp.pad(jnp.tile(b.astype(jnp.float32), R), (0, Wpad - Wout)).reshape(1, Wpad)

    # ---- per-row combined index stream ---------------------------------------
    base = [0]
    for v in vocab[:-1]:
        base.append(base[-1] + v)
    ids = jnp.stack([
        tokens.reshape(M) + base[0],
        notes.reshape(M) + base[1],
        jnp.repeat(genres, T) + base[2],
        jnp.repeat(singers, T) + base[3],
    ], axis=1).astype(jnp.int32)                                     # [M, 4]

    Mp = pl.cdiv(M, R)                                               # packed rows needed
    tile_cap = max(8, logical_tile_rows // R)
    if Mp >= 16:
        # ensure >=2 grid steps so the "parallel" axis can shard across 2 TCs (v7x)
        tile_cap = min(tile_cap, _round_up(pl.cdiv(Mp, 2), 8))
    TMp = max(8, _round_up(min(tile_cap, Mp), 8))
    Mp_pad = _round_up(Mp, TMp)

    ids = jnp.pad(ids, ((0, Mp_pad * R - M), (0, 0)))                # pad rows -> id 0 (valid)
    ids = ids.reshape(Mp_pad, R, 4)
    ids = ids + (jnp.arange(R, dtype=jnp.int32) * V_total)[None, :, None]
    ids = ids.reshape(Mp_pad, 4 * R)

    grid = (Mp_pad // TMp,)
    y = pl.pallas_call(
        _encoder_kernel,
        out_shape=jax.ShapeDtypeStruct((Mp_pad, Wpad), jnp.float32),
        grid_spec=pltpu.PrefetchScalarGridSpec(
            num_scalar_prefetch=0,
            grid=grid,
            in_specs=[
                pl.BlockSpec((TMp, 4 * R), lambda i: (i, 0)),        # streamed per tile
                pl.BlockSpec((K_pad, Wpad), lambda i: (0, 0)),       # resident fused table
                pl.BlockSpec((1, Wpad), lambda i: (0, 0)),           # resident bias
            ],
            out_specs=pl.BlockSpec((TMp, Wpad), lambda i: (i, 0)),
        ),
        compiler_params=pltpu.CompilerParams(
            dimension_semantics=("parallel",),
            vmem_limit_bytes=32 * 1024 * 1024,
        ),
    )(ids, big, bias)

    # [Mp_pad, Wpad] -> drop lane padding -> free row-major unpack -> drop pad rows.
    if Wpad != Wout:
        y = y[:, :Wout]
    return y.reshape(Mp_pad * R, E)[:M].reshape(B, T, E)


# ----------------------------------------------------------------------------
# Deterministic parameter init (mirrors module __init__ shapes)
# ----------------------------------------------------------------------------
def init_params(key, n_tokens, n_notes, n_genres, n_singers,
                tok_sz, note_sz, genre_sz, singer_sz):
    enc_sz = tok_sz + note_sz + genre_sz + singer_sz
    ks = jax.random.split(key, 6)
    token_emb = jax.random.normal(ks[0], (n_tokens, tok_sz), jnp.float32)
    note_emb = jax.random.normal(ks[1], (n_notes, note_sz), jnp.float32)
    genre_emb = jax.random.normal(ks[2], (n_genres, genre_sz), jnp.float32)
    singer_emb = jax.random.normal(ks[3], (n_singers, singer_sz), jnp.float32)
    # Linear with w_init_gain='linear' => xavier_uniform, gain=1; bias zeros.
    limit = (6.0 / (enc_sz + enc_sz)) ** 0.5
    linear_w = jax.random.uniform(ks[4], (enc_sz, enc_sz), jnp.float32,
                                  minval=-limit, maxval=limit)       # [out, in]
    linear_b = jnp.zeros((enc_sz,), jnp.float32)
    return {
        "token_emb": token_emb, "note_emb": note_emb,
        "genre_emb": genre_emb, "singer_emb": singer_emb,
        "linear_w": linear_w, "linear_b": linear_b,
    }


if __name__ == "__main__":
    # Small hyperparameters consistent with the module.
    N_TOKENS, N_NOTES, N_GENRES, N_SINGERS = 10, 12, 4, 5
    TOK_SZ, NOTE_SZ, GENRE_SZ, SINGER_SZ = 16, 8, 4, 4   # encoding_size = 32
    B, T = 2, 8

    key = jax.random.PRNGKey(0)
    k_p, k_t, k_n, k_g, k_s = jax.random.split(key, 5)

    params = init_params(k_p, N_TOKENS, N_NOTES, N_GENRES, N_SINGERS,
                         TOK_SZ, NOTE_SZ, GENRE_SZ, SINGER_SZ)

    tokens = jax.random.randint(k_t, (B, T), 0, N_TOKENS, jnp.int32)
    notes = jax.random.randint(k_n, (B, T), 0, N_NOTES, jnp.int32)
    genres = jax.random.randint(k_g, (B,), 0, N_GENRES, jnp.int32)
    singers = jax.random.randint(k_s, (B,), 0, N_SINGERS, jnp.int32)

    fwd = jax.jit(encoder_forward)
    out = jax.block_until_ready(fwd(params, tokens, notes, genres, singers))

    # Pure-JAX reference (faithful to the PyTorch forward), f32-exact linear.
    tok_e = jnp.take(params["token_emb"], tokens, axis=0)
    note_e = jnp.take(params["note_emb"], notes, axis=0)
    gen_e = jnp.broadcast_to(jnp.take(params["genre_emb"], genres, axis=0)[:, None, :],
                             (B, T, GENRE_SZ))
    sing_e = jnp.broadcast_to(jnp.take(params["singer_emb"], singers, axis=0)[:, None, :],
                              (B, T, SINGER_SZ))
    x_ref = jnp.concatenate([tok_e, note_e, gen_e, sing_e], axis=2)
    ref = jnp.einsum("bti,oi->bto", x_ref, params["linear_w"],
                     precision=_HIGHEST) + params["linear_b"]

    E_TOTAL = TOK_SZ + NOTE_SZ + GENRE_SZ + SINGER_SZ
    assert out.shape == (B, T, E_TOTAL)
    assert jnp.allclose(out, ref, atol=1e-4, rtol=1e-4)
    print("KERNEL_OK")
</pallas_src>

<mosaic_0001>
module attributes {stable_mosaic.version = 11 : i64} {
  func.func @_encoder_kernel(%arg0: i32, %arg1: memref<8x16xi32, #tpu.memory_space<vmem>>, %arg2: memref<128x128xf32, #tpu.memory_space<vmem>>, %arg3: memref<1x128xf32, #tpu.memory_space<vmem>>, %arg4: memref<8x128xf32, #tpu.memory_space<vmem>>) attributes {dimension_semantics = [#tpu.dimension_semantics<parallel>], iteration_bounds = array<i64: 1>, scalar_prefetch = 0 : i64, scratch_operands = 0 : i64, tpu.core_type = #tpu.core_type<tc>, window_params = [{transform_indices = @transform_0, window_bounds = array<i64: 8, 16>}, {pipeline_mode = #tpu.pipeline_mode<synchronous>, transform_indices = @transform_1, window_bounds = array<i64: 128, 128>}, {pipeline_mode = #tpu.pipeline_mode<synchronous>, transform_indices = @transform_2, window_bounds = array<i64: 1, 128>}, {transform_indices = @transform_3, window_bounds = array<i64: 8, 128>}]} {
    %c0 = arith.constant 0 : index
    %c0_0 = arith.constant 0 : index
    %0 = vector.load %arg1[%c0, %c0_0] : memref<8x16xi32, #tpu.memory_space<vmem>>, vector<8x16xi32>
    %c0_1 = arith.constant 0 : index
    %c0_2 = arith.constant 0 : index
    %1 = vector.load %arg2[%c0_1, %c0_2] : memref<128x128xf32, #tpu.memory_space<vmem>>, vector<128x128xf32>
    %2 = tpu.iota {dimensions = array<i32: 1>} : vector<8x128xi32>
    %3 = vector.extract_strided_slice %0 {offsets = [0, 0], sizes = [8, 1], strides = [1, 1]} : vector<8x16xi32> to vector<8x1xi32>
    %4 = vector.broadcast %3 : vector<8x1xi32> to vector<8x128xi32>
    %5 = arith.cmpi eq, %4, %2 : vector<8x128xi32>
    %6 = arith.extui %5 : vector<8x128xi1> to vector<8x128xi32>
    %7 = arith.sitofp %6 : vector<8x128xi32> to vector<8x128xf32>
    %8 = vector.extract_strided_slice %0 {offsets = [0, 1], sizes = [8, 1], strides = [1, 1]} : vector<8x16xi32> to vector<8x1xi32>
    %9 = vector.broadcast %8 : vector<8x1xi32> to vector<8x128xi32>
    %10 = arith.cmpi eq, %9, %2 : vector<8x128xi32>
    %11 = arith.extui %10 : vector<8x128xi1> to vector<8x128xi32>
    %12 = arith.sitofp %11 : vector<8x128xi32> to vector<8x128xf32>
    %13 = arith.addf %7, %12 : vector<8x128xf32>
    %14 = vector.extract_strided_slice %0 {offsets = [0, 2], sizes = [8, 1], strides = [1, 1]} : vector<8x16xi32> to vector<8x1xi32>
    %15 = vector.broadcast %14 : vector<8x1xi32> to vector<8x128xi32>
    %16 = arith.cmpi eq, %15, %2 : vector<8x128xi32>
    %17 = arith.extui %16 : vector<8x128xi1> to vector<8x128xi32>
    %18 = arith.sitofp %17 : vector<8x128xi32> to vector<8x128xf32>
    %19 = arith.addf %13, %18 : vector<8x128xf32>
    %20 = vector.extract_strided_slice %0 {offsets = [0, 3], sizes = [8, 1], strides = [1, 1]} : vector<8x16xi32> to vector<8x1xi32>
    %21 = vector.broadcast %20 : vector<8x1xi32> to vector<8x128xi32>
    %22 = arith.cmpi eq, %21, %2 : vector<8x128xi32>
    %23 = arith.extui %22 : vector<8x128xi1> to vector<8x128xi32>
    %24 = arith.sitofp %23 : vector<8x128xi32> to vector<8x128xf32>
    %25 = arith.addf %19, %24 : vector<8x128xf32>
    %26 = vector.extract_strided_slice %0 {offsets = [0, 4], sizes = [8, 1], strides = [1, 1]} : vector<8x16xi32> to vector<8x1xi32>
    %27 = vector.broadcast %26 : vector<8x1xi32> to vector<8x128xi32>
    %28 = arith.cmpi eq, %27, %2 : vector<8x128xi32>
    %29 = arith.extui %28 : vector<8x128xi1> to vector<8x128xi32>
    %30 = arith.sitofp %29 : vector<8x128xi32> to vector<8x128xf32>
    %31 = arith.addf %25, %30 : vector<8x128xf32>
    %32 = vector.extract_strided_slice %0 {offsets = [0, 5], sizes = [8, 1], strides = [1, 1]} : vector<8x16xi32> to vector<8x1xi32>
    %33 = vector.broadcast %32 : vector<8x1xi32> to vector<8x128xi32>
    %34 = arith.cmpi eq, %33, %2 : vector<8x128xi32>
    %35 = arith.extui %34 : vector<8x128xi1> to vector<8x128xi32>
    %36 = arith.sitofp %35 : vector<8x128xi32> to vector<8x128xf32>
    %37 = arith.addf %31, %36 : vector<8x128xf32>
    %38 = vector.extract_strided_slice %0 {offsets = [0, 6], sizes = [8, 1], strides = [1, 1]} : vector<8x16xi32> to vector<8x1xi32>
    %39 = vector.broadcast %38 : vector<8x1xi32> to vector<8x128xi32>
    %40 = arith.cmpi eq, %39, %2 : vector<8x128xi32>
    %41 = arith.extui %40 : vector<8x128xi1> to vector<8x128xi32>
    %42 = arith.sitofp %41 : vector<8x128xi32> to vector<8x128xf32>
    %43 = arith.addf %37, %42 : vector<8x128xf32>
    %44 = vector.extract_strided_slice %0 {offsets = [0, 7], sizes = [8, 1], strides = [1, 1]} : vector<8x16xi32> to vector<8x1xi32>
    %45 = vector.broadcast %44 : vector<8x1xi32> to vector<8x128xi32>
    %46 = arith.cmpi eq, %45, %2 : vector<8x128xi32>
    %47 = arith.extui %46 : vector<8x128xi1> to vector<8x128xi32>
    %48 = arith.sitofp %47 : vector<8x128xi32> to vector<8x128xf32>
    %49 = arith.addf %43, %48 : vector<8x128xf32>
    %50 = vector.extract_strided_slice %0 {offsets = [0, 8], sizes = [8, 1], strides = [1, 1]} : vector<8x16xi32> to vector<8x1xi32>
    %51 = vector.broadcast %50 : vector<8x1xi32> to vector<8x128xi32>
    %52 = arith.cmpi eq, %51, %2 : vector<8x128xi32>
    %53 = arith.extui %52 : vector<8x128xi1> to vector<8x128xi32>
    %54 = arith.sitofp %53 : vector<8x128xi32> to vector<8x128xf32>
    %55 = arith.addf %49, %54 : vector<8x128xf32>
    %56 = vector.extract_strided_slice %0 {offsets = [0, 9], sizes = [8, 1], strides = [1, 1]} : vector<8x16xi32> to vector<8x1xi32>
    %57 = vector.broadcast %56 : vector<8x1xi32> to vector<8x128xi32>
    %58 = arith.cmpi eq, %57, %2 : vector<8x128xi32>
    %59 = arith.extui %58 : vector<8x128xi1> to vector<8x128xi32>
    %60 = arith.sitofp %59 : vector<8x128xi32> to vector<8x128xf32>
    %61 = arith.addf %55, %60 : vector<8x128xf32>
    %62 = vector.extract_strided_slice %0 {offsets = [0, 10], sizes = [8, 1], strides = [1, 1]} : vector<8x16xi32> to vector<8x1xi32>
    %63 = vector.broadcast %62 : vector<8x1xi32> to vector<8x128xi32>
    %64 = arith.cmpi eq, %63, %2 : vector<8x128xi32>
    %65 = arith.extui %64 : vector<8x128xi1> to vector<8x128xi32>
    %66 = arith.sitofp %65 : vector<8x128xi32> to vector<8x128xf32>
    %67 = arith.addf %61, %66 : vector<8x128xf32>
    %68 = vector.extract_strided_slice %0 {offsets = [0, 11], sizes = [8, 1], strides = [1, 1]} : vector<8x16xi32> to vector<8x1xi32>
    %69 = vector.broadcast %68 : vector<8x1xi32> to vector<8x128xi32>
    %70 = arith.cmpi eq, %69, %2 : vector<8x128xi32>
    %71 = arith.extui %70 : vector<8x128xi1> to vector<8x128xi32>
    %72 = arith.sitofp %71 : vector<8x128xi32> to vector<8x128xf32>
    %73 = arith.addf %67, %72 : vector<8x128xf32>
    %74 = vector.extract_strided_slice %0 {offsets = [0, 12], sizes = [8, 1], strides = [1, 1]} : vector<8x16xi32> to vector<8x1xi32>
    %75 = vector.broadcast %74 : vector<8x1xi32> to vector<8x128xi32>
    %76 = arith.cmpi eq, %75, %2 : vector<8x128xi32>
    %77 = arith.extui %76 : vector<8x128xi1> to vector<8x128xi32>
    %78 = arith.sitofp %77 : vector<8x128xi32> to vector<8x128xf32>
    %79 = arith.addf %73, %78 : vector<8x128xf32>
    %80 = vector.extract_strided_slice %0 {offsets = [0, 13], sizes = [8, 1], strides = [1, 1]} : vector<8x16xi32> to vector<8x1xi32>
    %81 = vector.broadcast %80 : vector<8x1xi32> to vector<8x128xi32>
    %82 = arith.cmpi eq, %81, %2 : vector<8x128xi32>
    %83 = arith.extui %82 : vector<8x128xi1> to vector<8x128xi32>
    %84 = arith.sitofp %83 : vector<8x128xi32> to vector<8x128xf32>
    %85 = arith.addf %79, %84 : vector<8x128xf32>
    %86 = vector.extract_strided_slice %0 {offsets = [0, 14], sizes = [8, 1], strides = [1, 1]} : vector<8x16xi32> to vector<8x1xi32>
    %87 = vector.broadcast %86 : vector<8x1xi32> to vector<8x128xi32>
    %88 = arith.cmpi eq, %87, %2 : vector<8x128xi32>
    %89 = arith.extui %88 : vector<8x128xi1> to vector<8x128xi32>
    %90 = arith.sitofp %89 : vector<8x128xi32> to vector<8x128xf32>
    %91 = arith.addf %85, %90 : vector<8x128xf32>
    %92 = vector.extract_strided_slice %0 {offsets = [0, 15], sizes = [8, 1], strides = [1, 1]} : vector<8x16xi32> to vector<8x1xi32>
    %93 = vector.broadcast %92 : vector<8x1xi32> to vector<8x128xi32>
    %94 = arith.cmpi eq, %93, %2 : vector<8x128xi32>
    %95 = arith.extui %94 : vector<8x128xi1> to vector<8x128xi32>
    %96 = arith.sitofp %95 : vector<8x128xi32> to vector<8x128xf32>
    %97 = arith.addf %91, %96 : vector<8x128xf32>
    %cst = arith.constant dense<0.000000e+00> : vector<8x128xf32>
    %98 = tpu.matmul %97, %1, %cst {dimension_numbers = #tpu.dot_dimension_numbers<[1], [0], [0], [1], [0, 0, 1, 1], [], []>, precision = #tpu.contract_precision<fp32>} : vector<8x128xf32>, vector<128x128xf32>, vector<8x128xf32> -> vector<8x128xf32>
    %c0_3 = arith.constant 0 : index
    %c0_4 = arith.constant 0 : index
    %99 = vector.load %arg3[%c0_3, %c0_4] : memref<1x128xf32, #tpu.memory_space<vmem>>, vector<1x128xf32>
    %100 = vector.broadcast %99 : vector<1x128xf32> to vector<8x128xf32>
    %101 = arith.addf %98, %100 : vector<8x128xf32>
    %c0_5 = arith.constant 0 : index
    %c0_6 = arith.constant 0 : index
    %102 = vector.load %arg4[%c0_5, %c0_6] : memref<8x128xf32, #tpu.memory_space<vmem>>, vector<8x128xf32>
    tpu.vector_store %arg4[%c0_5, %c0_6], %101 {strides = array<i32>} : memref<8x128xf32, #tpu.memory_space<vmem>>, vector<8x128xf32>,
    return
  }
  func.func @transform_0(%arg0: i32) -> (i32, i32) {
    %c0_i32 = arith.constant 0 : i32
    %c0_i32_0 = arith.constant 0 : i32
    return %arg0, %c0_i32 : i32, i32
  }
  func.func @transform_1(%arg0: i32) -> (i32, i32) {
    %c0_i32 = arith.constant 0 : i32
    %c0_i32_0 = arith.constant 0 : i32
    %c0_i32_1 = arith.constant 0 : i32
    return %c0_i32, %c0_i32_0 : i32, i32
  }
  func.func @transform_2(%arg0: i32) -> (i32, i32) {
    %c0_i32 = arith.constant 0 : i32
    %c0_i32_0 = arith.constant 0 : i32
    %c0_i32_1 = arith.constant 0 : i32
    return %c0_i32, %c0_i32_0 : i32, i32
  }
  func.func @transform_3(%arg0: i32) -> (i32, i32) {
    %c0_i32 = arith.constant 0 : i32
    %c0_i32_0 = arith.constant 0 : i32
    return %arg0, %c0_i32 : i32, i32
  }
}

</mosaic_0001>

<llo_original>
// kernel: tile.8
$region0: #{tile.8}
  #allocation0 [shape = 's32[1]{0}', space=sflag, size = 0x4, scoped, tag = 'scoped memory for tile.8']
  %s0 = inlined_call_operand.vmem [shape: f32[32], index: 0, kind: input, shape index: {}]
  %s1 = inlined_call_operand.vmem [shape: f32[4,32], index: 1, kind: output, shape index: {}]
  // Predicated region
  $region2: #{tile.8} parent=0 // pred_check
    _
  $region3: #{tile.8} parent=0 // pred_check_branch
    %3 = sbr.rel (0) target = $region5
  $region4: #{tile.8} parent=0 // pred_region
    _
  $region5: #{tile.8} parent=0 // pred_fallthru
    _
  %v4 = vld [vmem:[%s0] ss:$0 sm:$0xff]
  %5 = vst [vmem:[%s1] sm:$0xf] %v4

// kernel: encoder_forward.1
$region0: #{encoder_forward.1}
  #allocation0 [shape = 'u32[]', space=smem, size = 0x4, offset = 0x4, fixed_abs, tag = 'smem constant byte address 0x4 - core index']
  #allocation1 [shape = 'u32[144,128]{1,0:T(1,128)}', space=vmem, size = 0x12000, scoped, tag = 'internal scratch']
  %s0 = inlined_call_operand.vmem [shape: s32[8,16], index: 0, kind: input, shape index: {}]
  %s1 = inlined_call_operand.vmem [shape: f32[128,128], index: 1, kind: input, shape index: {}]
  %s2 = inlined_call_operand.vmem [shape: f32[1,128], index: 2, kind: input, shape index: {}]
  %s3 = inlined_call_operand.vmem [shape: f32[8,128], index: 3, kind: output, shape index: {}]
  %s4 = sld [smem:[#allocation0]]
  $region22: #{encoder_forward.1} parent=0
    _
  %s6 = ssub.s32 1, %s4
  %s7 = scalar_select 0, %s6, %s4
  // Predicated region
  $region2: #{encoder_forward.1} parent=0 // pred_check
    _
  $region3: #{encoder_forward.1} parent=0 // pred_check_branch
    %9 = sbr.rel (0) target = $region5
  $region4: #{encoder_forward.1} parent=0 // pred_region
    _
  $region5: #{encoder_forward.1} parent=0 // pred_fallthru
    _
  // Predicated region
  $region6: #{encoder_forward.1} parent=0 // pred_check
    _
  $region7: #{encoder_forward.1} parent=0 // pred_check_branch
    %11 = sbr.rel (0) target = $region9
  $region8: #{encoder_forward.1} parent=0 // pred_region
    _
  $region9: #{encoder_forward.1} parent=0 // pred_fallthru
    _
  // Predicated region
  $region10: #{encoder_forward.1} parent=0 // pred_check
    _
  $region11: #{encoder_forward.1} parent=0 // pred_check_branch
    %13 = sbr.rel (0) target = $region13
  $region12: #{encoder_forward.1} parent=0 // pred_region
    _
  $region13: #{encoder_forward.1} parent=0 // pred_fallthru
    _
  %v14 = vld [vmem:[%s0] sm:$0xff]
  %v15 = vld [vmem:[%s1] sm:$0xff]
  %v16 = vld [vmem:[%s1 + $0x8] sm:$0xff]
  %v17 = vld [vmem:[%s1 + $0x10] sm:$0xff]
  %v18 = vld [vmem:[%s1 + $0x18] sm:$0xff]
  %v19 = vld [vmem:[%s1 + $0x20] sm:$0xff]
  %v20 = vld [vmem:[%s1 + $0x28] sm:$0xff]
  %v21 = vld [vmem:[%s1 + $0x30] sm:$0xff]
  %v22 = vld [vmem:[%s1 + $0x38] sm:$0xff]
  %v23 = vld [vmem:[%s1 + $0x40] sm:$0xff]
  %v24 = vld [vmem:[%s1 + $0x48] sm:$0xff]
  %v25 = vld [vmem:[%s1 + $0x50] sm:$0xff]
  %v26 = vld [vmem:[%s1 + $0x58] sm:$0xff]
  %v27 = vld [vmem:[%s1 + $0x60] sm:$0xff]
  %v28 = vld [vmem:[%s1 + $0x68] sm:$0xff]
  %v29 = vld [vmem:[%s1 + $0x70] sm:$0xff]
  %v30 = vld [vmem:[%s1 + $0x78] sm:$0xff]
  %v31 = vlaneseq
  %v32 = vand.u32 %v31, 127
  %33 = vset.pattern.permute.xlu0 0
  %34 = vperm.xlu0 %33, %v14
  %v35 = vpop.permute.xlu0 %34
  %vm36 = vcmp.eq.s32.totalorder %v35, %v32
  %v37 = vsel %vm36, 1, 0
  %v38 = vcvt.s32.f32 %v37
  %39 = vset.pattern.permute.xlu0 1
  %40 = vperm.xlu0 %39, %v14
  %v41 = vpop.permute.xlu0 %40
  %vm42 = vcmp.eq.s32.totalorder %v41, %v32
  %v43 = vsel %vm42, 1, 0
  %v44 = vcvt.s32.f32 %v43
  %v45 = vadd.f32 %v38, %v44
  %46 = vset.pattern.permute.xlu0 2
  %47 = vperm.xlu0 %46, %v14
  %v48 = vpop.permute.xlu0 %47
  %vm49 = vcmp.eq.s32.totalorder %v48, %v32
  %v50 = vsel %vm49, 1, 0
  %v51 = vcvt.s32.f32 %v50
  %v52 = vadd.f32 %v45, %v51
  %53 = vset.pattern.permute.xlu0 3
  %54 = vperm.xlu0 %53, %v14
  %v55 = vpop.permute.xlu0 %54
  %vm56 = vcmp.eq.s32.totalorder %v55, %v32
  %v57 = vsel %vm56, 1, 0
  %v58 = vcvt.s32.f32 %v57
  %v59 = vadd.f32 %v52, %v58
  %60 = vset.pattern.permute.xlu0 4
  %61 = vperm.xlu0 %60, %v14
  %v62 = vpop.permute.xlu0 %61
  %vm63 = vcmp.eq.s32.totalorder %v62, %v32
  %v64 = vsel %vm63, 1, 0
  %v65 = vcvt.s32.f32 %v64
  %v66 = vadd.f32 %v59, %v65
  %67 = vset.pattern.permute.xlu0 5
  %68 = vperm.xlu0 %67, %v14
  %v69 = vpop.permute.xlu0 %68
  %vm70 = vcmp.eq.s32.totalorder %v69, %v32
  %v71 = vsel %vm70, 1, 0
  %v72 = vcvt.s32.f32 %v71
  %v73 = vadd.f32 %v66, %v72
  %74 = vset.pattern.permute.xlu0 6
  %75 = vperm.xlu0 %74, %v14
  %v76 = vpop.permute.xlu0 %75
  %vm77 = vcmp.eq.s32.totalorder %v76, %v32
  %v78 = vsel %vm77, 1, 0
  %v79 = vcvt.s32.f32 %v78
  %v80 = vadd.f32 %v73, %v79
  %81 = vset.pattern.permute.xlu0 7
  %82 = vperm.xlu0 %81, %v14
  %v83 = vpop.permute.xlu0 %82
  %vm84 = vcmp.eq.s32.totalorder %v83, %v32
  %v85 = vsel %vm84, 1, 0
  %v86 = vcvt.s32.f32 %v85
  %v87 = vadd.f32 %v80, %v86
  %88 = vset.pattern.permute.xlu0 8
  %89 = vperm.xlu0 %88, %v14
  %v90 = vpop.permute.xlu0 %89
  %vm91 = vcmp.eq.s32.totalorder %v90, %v32
  %v92 = vsel %vm91, 1, 0
  %v93 = vcvt.s32.f32 %v92
  %v94 = vadd.f32 %v87, %v93
  %95 = vset.pattern.permute.xlu0 9
  %96 = vperm.xlu0 %95, %v14
  %v97 = vpop.permute.xlu0 %96
  %vm98 = vcmp.eq.s32.totalorder %v97, %v32
  %v99 = vsel %vm98, 1, 0
  %v100 = vcvt.s32.f32 %v99
  %v101 = vadd.f32 %v94, %v100
  %102 = vset.pattern.permute.xlu0 10
  %103 = vperm.xlu0 %102, %v14
  %v104 = vpop.permute.xlu0 %103
  %vm105 = vcmp.eq.s32.totalorder %v104, %v32
  %v106 = vsel %vm105, 1, 0
  %v107 = vcvt.s32.f32 %v106
  %v108 = vadd.f32 %v101, %v107
  %109 = vset.pattern.permute.xlu0 11
  %110 = vperm.xlu0 %109, %v14
  %v111 = vpop.permute.xlu0 %110
  %vm112 = vcmp.eq.s32.totalorder %v111, %v32
  %v113 = vsel %vm112, 1, 0
  %v114 = vcvt.s32.f32 %v113
  %v115 = vadd.f32 %v108, %v114
  %116 = vset.pattern.permute.xlu0 12
  %117 = vperm.xlu0 %116, %v14
  %v118 = vpop.permute.xlu0 %117
  %vm119 = vcmp.eq.s32.totalorder %v118, %v32
  %v120 = vsel %vm119, 1, 0
  %v121 = vcvt.s32.f32 %v120
  %v122 = vadd.f32 %v115, %v121
  %123 = vset.pattern.permute.xlu0 13
  %124 = vperm.xlu0 %123, %v14
  %v125 = vpop.permute.xlu0 %124
  %vm126 = vcmp.eq.s32.totalorder %v125, %v32
  %v127 = vsel %vm126, 1, 0
  %v128 = vcvt.s32.f32 %v127
  %v129 = vadd.f32 %v122, %v128
  %130 = vset.pattern.permute.xlu0 14
  %131 = vperm.xlu0 %130, %v14
  %v132 = vpop.permute.xlu0 %131
  %vm133 = vcmp.eq.s32.totalorder %v132, %v32
  %v134 = vsel %vm133, 1, 0
  %v135 = vcvt.s32.f32 %v134
  %v136 = vadd.f32 %v129, %v135
  %137 = vset.pattern.permute.xlu0 15
  %138 = vperm.xlu0 %137, %v14
  %v139 = vpop.permute.xlu0 %138
  %vm140 = vcmp.eq.s32.totalorder %v139, %v32
  %v141 = vsel %vm140, 1, 0
  %v142 = vcvt.s32.f32 %v141
  %v143 = vadd.f32 %v136, %v142
  %v144 = vld [vmem:[%s2] sm:$0x1]
  %v146 = vlaneseq
  %v147 = vshrl.u32 %v146, 7
  %v148 = vsub.s32 0, %v147
  %v149 = vrot.slane %v144, %v148
  %151 = vmatprep.subr.mxu0 0.0
  %v152 = vand.u32 %v15, 4294901760
  %153 = vmatpush1.msra.mxu0 %v152
  %154 = vmatprep.subr.mxu0 0.0
  %v155 = vand.u32 %v16, 4294901760
  %156 = vmatpush1.msra.mxu0 %v155
  %157 = vmatprep.subr.mxu0 0.0
  %v158 = vand.u32 %v17, 4294901760
  %159 = vmatpush1.msra.mxu0 %v158
  %160 = vmatprep.subr.mxu0 0.0
  %v161 = vand.u32 %v18, 4294901760
  %162 = vmatpush1.msra.mxu0 %v161
  %163 = vmatprep.subr.mxu0 0.0
  %v164 = vand.u32 %v19, 4294901760
  %165 = vmatpush1.msra.mxu0 %v164
  %166 = vmatprep.subr.mxu0 0.0
  %v167 = vand.u32 %v20, 4294901760
  %168 = vmatpush1.msra.mxu0 %v167
  %169 = vmatprep.subr.mxu0 0.0
  %v170 = vand.u32 %v21, 4294901760
  %171 = vmatpush1.msra.mxu0 %v170
  %172 = vmatprep.subr.mxu0 0.0
  %v173 = vand.u32 %v22, 4294901760
  %174 = vmatpush1.msra.mxu0 %v173
  %175 = vmatprep.subr.mxu0 0.0
  %v176 = vand.u32 %v23, 4294901760
  %177 = vmatpush1.msra.mxu0 %v176
  %178 = vmatprep.subr.mxu0 0.0
  %v179 = vand.u32 %v24, 4294901760
  %180 = vmatpush1.msra.mxu0 %v179
  %181 = vmatprep.subr.mxu0 0.0
  %v182 = vand.u32 %v25, 4294901760
  %183 = vmatpush1.msra.mxu0 %v182
  %184 = vmatprep.subr.mxu0 0.0
  %v185 = vand.u32 %v26, 4294901760
  %186 = vmatpush1.msra.mxu0 %v185
  %187 = vmatprep.subr.mxu0 0.0
  %v188 = vand.u32 %v27, 4294901760
  %189 = vmatpush1.msra.mxu0 %v188
  %190 = vmatprep.subr.mxu0 0.0
  %v191 = vand.u32 %v28, 4294901760
  %192 = vmatpush1.msra.mxu0 %v191
  %193 = vmatprep.subr.mxu0 0.0
  %v194 = vand.u32 %v29, 4294901760
  %195 = vmatpush1.msra.mxu0 %v194
  %196 = vmatprep.subr.mxu0 0.0
  %v197 = vand.u32 %v30, 4294901760
  %198 = vmatpush1.msra.mxu0 %v197
  %199 = vmatprep.subr.mxu0 0.0
  %200 = vmatpush1.msra.mxu0 0.0
  %201 = vmatprep.subr.mxu0 0.0
  %202 = vmatpush1.msra.mxu0 0.0
  %203 = vmatprep.subr.mxu0 0.0
  %204 = vmatpush1.msra.mxu0 0.0
  %205 = vmatprep.subr.mxu0 0.0
  %206 = vmatpush1.msra.mxu0 0.0
  %207 = vmatprep.subr.mxu0 0.0
  %208 = vmatpush1.msra.mxu0 0.0
  %209 = vmatprep.subr.mxu0 0.0
  %210 = vmatpush1.msra.mxu0 0.0
  %211 = vmatprep.subr.mxu0 0.0
  %212 = vmatpush1.msra.mxu0 0.0
  %213 = vmatprep.subr.mxu0 0.0
  %214 = vmatpush1.msra.mxu0 0.0
  %215 = vmatprep.subr.mxu0 0.0
  %216 = vmatpush1.msra.mxu0 0.0
  %217 = vmatprep.subr.mxu0 0.0
  %218 = vmatpush1.msra.mxu0 0.0
  %219 = vmatprep.subr.mxu0 0.0
  %220 = vmatpush1.msra.mxu0 0.0
  %221 = vmatprep.subr.mxu0 0.0
  %222 = vmatpush1.msra.mxu0 0.0
  %223 = vmatprep.subr.mxu0 0.0
  %224 = vmatpush1.msra.mxu0 0.0
  %225 = vmatprep.subr.mxu0 0.0
  %226 = vmatpush1.msra.mxu0 0.0
  %227 = vmatprep.subr.mxu0 0.0
  %228 = vmatpush1.msra.mxu0 0.0
  %229 = vmatprep.subr.mxu0 0.0
  %230 = vmatpush1.msra.mxu0 0.0
  %231 = vmatprep.mubr.f32.mxu0 0.0
  %v232 = vand.u32 %v143, 4294901760
  %v233 = vsub.f32 %v143, %v232
  %v234 = vand.u32 %v233, 4294901760
  %v235 = vsub.f32 %v233, %v234
  %v236 = vand.u32 %v235, 4294901760
  %237 = vmatmul.mubr.f32.gmra.mrb[0].mxu0 %v236
  %v238 = vpop.f32.mrb[0].mxu0
  %v239 = vadd.f32 %v149, %v238
  %v240 = vpop.f32.mrb[0].mxu0
  %241 = vdwg.mxu0
  %242 = vmatprep.subr.mxu0 0.0
  %v243 = vand.u32 %v15, 4294901760
  %v244 = vsub.f32 %v15, %v243
  %v245 = vand.u32 %v244, 4294901760
  %v246 = vsub.f32 %v244, %v245
  %v247 = vand.u32 %v246, 4294901760
  %248 = vmatpush1.msra.mxu0 %v247
  %249 = vmatprep.subr.mxu0 0.0
  %v250 = vand.u32 %v16, 4294901760
  %v251 = vsub.f32 %v16, %v250
  %v252 = vand.u32 %v251, 4294901760
  %v253 = vsub.f32 %v251, %v252
  %v254 = vand.u32 %v253, 4294901760
  %255 = vmatpush1.msra.mxu0 %v254
  %256 = vmatprep.subr.mxu0 0.0
  %v257 = vand.u32 %v17, 4294901760
  %v258 = vsub.f32 %v17, %v257
  %v259 = vand.u32 %v258, 4294901760
  %v260 = vsub.f32 %v258, %v259
  %v261 = vand.u32 %v260, 4294901760
  %262 = vmatpush1.msra.mxu0 %v261
  %263 = vmatprep.subr.mxu0 0.0
  %v264 = vand.u32 %v18, 4294901760
  %v265 = vsub.f32 %v18, %v264
  %v266 = vand.u32 %v265, 4294901760
  %v267 = vsub.f32 %v265, %v266
  %v268 = vand.u32 %v267, 4294901760
  %269 = vmatpush1.msra.mxu0 %v268
  %270 = vmatprep.subr.mxu0 0.0
  %v271 = vand.u32 %v19, 4294901760
  %v272 = vsub.f32 %v19, %v271
  %v273 = vand.u32 %v272, 4294901760
  %v274 = vsub.f32 %v272, %v273
  %v275 = vand.u32 %v274, 4294901760
  %276 = vmatpush1.msra.mxu0 %v275
  %277 = vmatprep.subr.mxu0 0.0
  %v278 = vand.u32 %v20, 4294901760
  %v279 = vsub.f32 %v20, %v278
  %v280 = vand.u32 %v279, 4294901760
  %v281 = vsub.f32 %v279, %v280
  %v282 = vand.u32 %v281, 4294901760
  %283 = vmatpush1.msra.mxu0 %v282
  %284 = vmatprep.subr.mxu0 0.0
  %v285 = vand.u32 %v21, 4294901760
  %v286 = vsub.f32 %v21, %v285
  %v287 = vand.u32 %v286, 4294901760
  %v288 = vsub.f32 %v286, %v287
  %v289 = vand.u32 %v288, 4294901760
  %290 = vmatpush1.msra.mxu0 %v289
  %291 = vmatprep.subr.mxu0 0.0
  %v292 = vand.u32 %v22, 4294901760
  %v293 = vsub.f32 %v22, %v292
  %v294 = vand.u32 %v293, 4294901760
  %v295 = vsub.f32 %v293, %v294
  %v296 = vand.u32 %v295, 4294901760
  %297 = vmatpush1.msra.mxu0 %v296
  %298 = vmatprep.subr.mxu0 0.0
  %v299 = vand.u32 %v23, 4294901760
  %v300 = vsub.f32 %v23, %v299
  %v301 = vand.u32 %v300, 4294901760
  %v302 = vsub.f32 %v300, %v301
  %v303 = vand.u32 %v302, 4294901760
  %304 = vmatpush1.msra.mxu0 %v303
  %305 = vmatprep.subr.mxu0 0.0
  %v306 = vand.u32 %v24, 4294901760
  %v307 = vsub.f32 %v24, %v306
  %v308 = vand.u32 %v307, 4294901760
  %v309 = vsub.f32 %v307, %v308
  %v310 = vand.u32 %v309, 4294901760
  %311 = vmatpush1.msra.mxu0 %v310
  %312 = vmatprep.subr.mxu0 0.0
  %v313 = vand.u32 %v25, 4294901760
  %v314 = vsub.f32 %v25, %v313
  %v315 = vand.u32 %v314, 4294901760
  %v316 = vsub.f32 %v314, %v315
  %v317 = vand.u32 %v316, 4294901760
  %318 = vmatpush1.msra.mxu0 %v317
  %319 = vmatprep.subr.mxu0 0.0
  %v320 = vand.u32 %v26, 4294901760
  %v321 = vsub.f32 %v26, %v320
  %v322 = vand.u32 %v321, 4294901760
  %v323 = vsub.f32 %v321, %v322
  %v324 = vand.u32 %v323, 4294901760
  %325 = vmatpush1.msra.mxu0 %v324
  %326 = vmatprep.subr.mxu0 0.0
  %v327 = vand.u32 %v27, 4294901760
  %v328 = vsub.f32 %v27, %v327
  %v329 = vand.u32 %v328, 4294901760
  %v330 = vsub.f32 %v328, %v329
  %v331 = vand.u32 %v330, 4294901760
  %332 = vmatpush1.msra.mxu0 %v331
  %333 = vmatprep.subr.mxu0 0.0
  %v334 = vand.u32 %v28, 4294901760
  %v335 = vsub.f32 %v28, %v334
  %v336 = vand.u32 %v335, 4294901760
  %v337 = vsub.f32 %v335, %v336
  %v338 = vand.u32 %v337, 4294901760
  %339 = vmatpush1.msra.mxu0 %v338
  %340 = vmatprep.subr.mxu0 0.0
  %v341 = vand.u32 %v29, 4294901760
  %v342 = vsub.f32 %v29, %v341
  %v343 = vand.u32 %v342, 4294901760
  %v344 = vsub.f32 %v342, %v343
  %v345 = vand.u32 %v344, 4294901760
  %346 = vmatpush1.msra.mxu0 %v345
  %347 = vmatprep.subr.mxu0 0.0
  %v348 = vand.u32 %v30, 4294901760
  %v349 = vsub.f32 %v30, %v348
  %v350 = vand.u32 %v349, 4294901760
  %v351 = vsub.f32 %v349, %v350
  %v352 = vand.u32 %v351, 4294901760
  %353 = vmatpush1.msra.mxu0 %v352
  %354 = vmatprep.subr.mxu0 0.0
  %355 = vmatpush1.msra.mxu0 0.0
  %356 = vmatprep.subr.mxu0 0.0
  %357 = vmatpush1.msra.mxu0 0.0
  %358 = vmatprep.subr.mxu0 0.0
  %359 = vmatpush1.msra.mxu0 0.0
  %360 = vmatprep.subr.mxu0 0.0
  %361 = vmatpush1.msra.mxu0 0.0
  %362 = vmatprep.subr.mxu0 0.0
  %363 = vmatpush1.msra.mxu0 0.0
  %364 = vmatprep.subr.mxu0 0.0
  %365 = vmatpush1.msra.mxu0 0.0
  %366 = vmatprep.subr.mxu0 0.0
  %367 = vmatpush1.msra.mxu0 0.0
  %368 = vmatprep.subr.mxu0 0.0
  %369 = vmatpush1.msra.mxu0 0.0
  %370 = vmatprep.subr.mxu0 0.0
  %371 = vmatpush1.msra.mxu0 0.0
  %372 = vmatprep.subr.mxu0 0.0
  %373 = vmatpush1.msra.mxu0 0.0
  %374 = vmatprep.subr.mxu0 0.0
  %375 = vmatpush1.msra.mxu0 0.0
  %376 = vmatprep.subr.mxu0 0.0
  %377 = vmatpush1.msra.mxu0 0.0
  %378 = vmatprep.subr.mxu0 0.0
  %379 = vmatpush1.msra.mxu0 0.0
  %380 = vmatprep.subr.mxu0 0.0
  %381 = vmatpush1.msra.mxu0 0.0
  %382 = vmatprep.subr.mxu0 0.0
  %383 = vmatpush1.msra.mxu0 0.0
  %384 = vmatprep.subr.mxu0 0.0
  %385 = vmatpush1.msra.mxu0 0.0
  %386 = vmatprep.mubr.f32.mxu0 0.0
  %v387 = vand.u32 %v143, 4294901760
  %388 = vmatmul.mubr.f32.gmra.mrb[0].mxu0 %v387
  %v389 = vpop.f32.mrb[0].mxu0
  %v390 = vadd.f32 %v239, %v389
  %v391 = vpop.f32.mrb[0].mxu0
  %392 = vdwg.mxu0
  %393 = vmatprep.subr.mxu0 0.0
  %v394 = vand.u32 %v15, 4294901760
  %v395 = vsub.f32 %v15, %v394
  %396 = vmatpush1.msra.mxu0 %v395
  %397 = vmatprep.subr.mxu0 0.0
  %v398 = vand.u32 %v16, 4294901760
  %v399 = vsub.f32 %v16, %v398
  %400 = vmatpush1.msra.mxu0 %v399
  %401 = vmatprep.subr.mxu0 0.0
  %v402 = vand.u32 %v17, 4294901760
  %v403 = vsub.f32 %v17, %v402
  %404 = vmatpush1.msra.mxu0 %v403
  %405 = vmatprep.subr.mxu0 0.0
  %v406 = vand.u32 %v18, 4294901760
  %v407 = vsub.f32 %v18, %v406
  %408 = vmatpush1.msra.mxu0 %v407
  %409 = vmatprep.subr.mxu0 0.0
  %v410 = vand.u32 %v19, 4294901760
  %v411 = vsub.f32 %v19, %v410
  %412 = vmatpush1.msra.mxu0 %v411
  %413 = vmatprep.subr.mxu0 0.0
  %v414 = vand.u32 %v20, 4294901760
  %v415 = vsub.f32 %v20, %v414
  %416 = vmatpush1.msra.mxu0 %v415
  %417 = vmatprep.subr.mxu0 0.0
  %v418 = vand.u32 %v21, 4294901760
  %v419 = vsub.f32 %v21, %v418
  %420 = vmatpush1.msra.mxu0 %v419
  %421 = vmatprep.subr.mxu0 0.0
  %v422 = vand.u32 %v22, 4294901760
  %v423 = vsub.f32 %v22, %v422
  %424 = vmatpush1.msra.mxu0 %v423
  %425 = vmatprep.subr.mxu0 0.0
  %v426 = vand.u32 %v23, 4294901760
  %v427 = vsub.f32 %v23, %v426
  %428 = vmatpush1.msra.mxu0 %v427
  %429 = vmatprep.subr.mxu0 0.0
  %v430 = vand.u32 %v24, 4294901760
  %v431 = vsub.f32 %v24, %v430
  %432 = vmatpush1.msra.mxu0 %v431
  %433 = vmatprep.subr.mxu0 0.0
  %v434 = vand.u32 %v25, 4294901760
  %v435 = vsub.f32 %v25, %v434
  %436 = vmatpush1.msra.mxu0 %v435
  %437 = vmatprep.subr.mxu0 0.0
  %v438 = vand.u32 %v26, 4294901760
  %v439 = vsub.f32 %v26, %v438
  %440 = vmatpush1.msra.mxu0 %v439
  %441 = vmatprep.subr.mxu0 0.0
  %v442 = vand.u32 %v27, 4294901760
  %v443 = vsub.f32 %v27, %v442
  %444 = vmatpush1.msra.mxu0 %v443
  %445 = vmatprep.subr.mxu0 0.0
  %v446 = vand.u32 %v28, 4294901760
  %v447 = vsub.f32 %v28, %v446
  %448 = vmatpush1.msra.mxu0 %v447
  %449 = vmatprep.subr.mxu0 0.0
  %v450 = vand.u32 %v29, 4294901760
  %v451 = vsub.f32 %v29, %v450
  %452 = vmatpush1.msra.mxu0 %v451
  %453 = vmatprep.subr.mxu0 0.0
  %v454 = vand.u32 %v30, 4294901760
  %v455 = vsub.f32 %v30, %v454
  %456 = vmatpush1.msra.mxu0 %v455
  %457 = vmatprep.subr.mxu0 0.0
  %458 = vmatpush1.msra.mxu0 0.0
  %459 = vmatprep.subr.mxu0 0.0
  %460 = vmatpush1.msra.mxu0 0.0
  %461 = vmatprep.subr.mxu0 0.0
  %462 = vmatpush1.msra.mxu0 0.0
  %463 = vmatprep.subr.mxu0 0.0
  %464 = vmatpush1.msra.mxu0 0.0
  %465 = vmatprep.subr.mxu0 0.0
  %466 = vmatpush1.msra.mxu0 0.0
  %467 = vmatprep.subr.mxu0 0.0
  %468 = vmatpush1.msra.mxu0 0.0
  %469 = vmatprep.subr.mxu0 0.0
  %470 = vmatpush1.msra.mxu0 0.0
  %471 = vmatprep.subr.mxu0 0.0
  %472 = vmatpush1.msra.mxu0 0.0
  %473 = vmatprep.subr.mxu0 0.0
  %474 = vmatpush1.msra.mxu0 0.0
  %475 = vmatprep.subr.mxu0 0.0
  %476 = vmatpush1.msra.mxu0 0.0
  %477 = vmatprep.subr.mxu0 0.0
  %478 = vmatpush1.msra.mxu0 0.0
  %479 = vmatprep.subr.mxu0 0.0
  %480 = vmatpush1.msra.mxu0 0.0
  %481 = vmatprep.subr.mxu0 0.0
  %482 = vmatpush1.msra.mxu0 0.0
  %483 = vmatprep.subr.mxu0 0.0
  %484 = vmatpush1.msra.mxu0 0.0
  %485 = vmatprep.subr.mxu0 0.0
  %486 = vmatpush1.msra.mxu0 0.0
  %487 = vmatprep.subr.mxu0 0.0
  %488 = vmatpush1.msra.mxu0 0.0
  %489 = vmatprep.mubr.f32.mxu0 0.0
  %v490 = vand.u32 %v143, 4294901760
  %v491 = vsub.f32 %v143, %v490
  %492 = vmatmul.mubr.f32.gmra.mrb[0].mxu0 %v491
  %v493 = vpop.f32.mrb[0].mxu0
  %v494 = vadd.f32 %v390, %v493
  %v495 = vpop.f32.mrb[0].mxu0
  %496 = vdwg.mxu0
  %497 = vmatprep.subr.mxu0 0.0
  %v498 = vand.u32 %v15, 4294901760
  %499 = vmatpush1.msra.mxu0 %v498
  %500 = vmatprep.subr.mxu0 0.0
  %v501 = vand.u32 %v16, 4294901760
  %502 = vmatpush1.msra.mxu0 %v501
  %503 = vmatprep.subr.mxu0 0.0
  %v504 = vand.u32 %v17, 4294901760
  %505 = vmatpush1.msra.mxu0 %v504
  %506 = vmatprep.subr.mxu0 0.0
  %v507 = vand.u32 %v18, 4294901760
  %508 = vmatpush1.msra.mxu0 %v507
  %509 = vmatprep.subr.mxu0 0.0
  %v510 = vand.u32 %v19, 4294901760
  %511 = vmatpush1.msra.mxu0 %v510
  %512 = vmatprep.subr.mxu0 0.0
  %v513 = vand.u32 %v20, 4294901760
  %514 = vmatpush1.msra.mxu0 %v513
  %515 = vmatprep.subr.mxu0 0.0
  %v516 = vand.u32 %v21, 4294901760
  %517 = vmatpush1.msra.mxu0 %v516
  %518 = vmatprep.subr.mxu0 0.0
  %v519 = vand.u32 %v22, 4294901760
  %520 = vmatpush1.msra.mxu0 %v519
  %521 = vmatprep.subr.mxu0 0.0
  %v522 = vand.u32 %v23, 4294901760
  %523 = vmatpush1.msra.mxu0 %v522
  %524 = vmatprep.subr.mxu0 0.0
  %v525 = vand.u32 %v24, 4294901760
  %526 = vmatpush1.msra.mxu0 %v525
  %527 = vmatprep.subr.mxu0 0.0
  %v528 = vand.u32 %v25, 4294901760
  %529 = vmatpush1.msra.mxu0 %v528
  %530 = vmatprep.subr.mxu0 0.0
  %v531 = vand.u32 %v26, 4294901760
  %532 = vmatpush1.msra.mxu0 %v531
  %533 = vmatprep.subr.mxu0 0.0
  %v534 = vand.u32 %v27, 4294901760
  %535 = vmatpush1.msra.mxu0 %v534
  %536 = vmatprep.subr.mxu0 0.0
  %v537 = vand.u32 %v28, 4294901760
  %538 = vmatpush1.msra.mxu0 %v537
  %539 = vmatprep.subr.mxu0 0.0
  %v540 = vand.u32 %v29, 4294901760
  %541 = vmatpush1.msra.mxu0 %v540
  %542 = vmatprep.subr.mxu0 0.0
  %v543 = vand.u32 %v30, 4294901760
  %544 = vmatpush1.msra.mxu0 %v543
  %545 = vmatprep.subr.mxu0 0.0
  %546 = vmatpush1.msra.mxu0 0.0
  %547 = vmatprep.subr.mxu0 0.0
  %548 = vmatpush1.msra.mxu0 0.0
  %549 = vmatprep.subr.mxu0 0.0
  %550 = vmatpush1.msra.mxu0 0.0
  %551 = vmatprep.subr.mxu0 0.0
  %552 = vmatpush1.msra.mxu0 0.0
  %553 = vmatprep.subr.mxu0 0.0
  %554 = vmatpush1.msra.mxu0 0.0
  %555 = vmatprep.subr.mxu0 0.0
  %556 = vmatpush1.msra.mxu0 0.0
  %557 = vmatprep.subr.mxu0 0.0
  %558 = vmatpush1.msra.mxu0 0.0
  %559 = vmatprep.subr.mxu0 0.0
  %560 = vmatpush1.msra.mxu0 0.0
  %561 = vmatprep.subr.mxu0 0.0
  %562 = vmatpush1.msra.mxu0 0.0
  %563 = vmatprep.subr.mxu0 0.0
  %564 = vmatpush1.msra.mxu0 0.0
  %565 = vmatprep.subr.mxu0 0.0
  %566 = vmatpush1.msra.mxu0 0.0
  %567 = vmatprep.subr.mxu0 0.0
  %568 = vmatpush1.msra.mxu0 0.0
  %569 = vmatprep.subr.mxu0 0.0
  %570 = vmatpush1.msra.mxu0 0.0
  %571 = vmatprep.subr.mxu0 0.0
  %572 = vmatpush1.msra.mxu0 0.0
  %573 = vmatprep.subr.mxu0 0.0
  %574 = vmatpush1.msra.mxu0 0.0
  %575 = vmatprep.subr.mxu0 0.0
  %576 = vmatpush1.msra.mxu0 0.0
  %577 = vmatprep.mubr.f32.mxu0 0.0
  %v578 = vand.u32 %v143, 4294901760
  %v579 = vsub.f32 %v143, %v578
  %v580 = vand.u32 %v579, 4294901760
  %581 = vmatmul.mubr.f32.gmra.mrb[0].mxu0 %v580
  %v582 = vpop.f32.mrb[0].mxu0
  %v583 = vadd.f32 %v494, %v582
  %v584 = vpop.f32.mrb[0].mxu0
  %585 = vdwg.mxu0
  %586 = vmatprep.subr.mxu0 0.0
  %v587 = vand.u32 %v15, 4294901760
  %v588 = vsub.f32 %v15, %v587
  %v589 = vand.u32 %v588, 4294901760
  %590 = vmatpush1.msra.mxu0 %v589
  %591 = vmatprep.subr.mxu0 0.0
  %v592 = vand.u32 %v16, 4294901760
  %v593 = vsub.f32 %v16, %v592
  %v594 = vand.u32 %v593, 4294901760
  %595 = vmatpush1.msra.mxu0 %v594
  %596 = vmatprep.subr.mxu0 0.0
  %v597 = vand.u32 %v17, 4294901760
  %v598 = vsub.f32 %v17, %v597
  %v599 = vand.u32 %v598, 4294901760
  %600 = vmatpush1.msra.mxu0 %v599
  %601 = vmatprep.subr.mxu0 0.0
  %v602 = vand.u32 %v18, 4294901760
  %v603 = vsub.f32 %v18, %v602
  %v604 = vand.u32 %v603, 4294901760
  %605 = vmatpush1.msra.mxu0 %v604
  %606 = vmatprep.subr.mxu0 0.0
  %v607 = vand.u32 %v19, 4294901760
  %v608 = vsub.f32 %v19, %v607
  %v609 = vand.u32 %v608, 4294901760
  %610 = vmatpush1.msra.mxu0 %v609
  %611 = vmatprep.subr.mxu0 0.0
  %v612 = vand.u32 %v20, 4294901760
  %v613 = vsub.f32 %v20, %v612
  %v614 = vand.u32 %v613, 4294901760
  %615 = vmatpush1.msra.mxu0 %v614
  %616 = vmatprep.subr.mxu0 0.0
  %v617 = vand.u32 %v21, 4294901760
  %v618 = vsub.f32 %v21, %v617
  %v619 = vand.u32 %v618, 4294901760
  %620 = vmatpush1.msra.mxu0 %v619
  %621 = vmatprep.subr.mxu0 0.0
  %v622 = vand.u32 %v22, 4294901760
  %v623 = vsub.f32 %v22, %v622
  %v624 = vand.u32 %v623, 4294901760
  %625 = vmatpush1.msra.mxu0 %v624
  %626 = vmatprep.subr.mxu0 0.0
  %v627 = vand.u32 %v23, 4294901760
  %v628 = vsub.f32 %v23, %v627
  %v629 = vand.u32 %v628, 4294901760
  %630 = vmatpush1.msra.mxu0 %v629
  %631 = vmatprep.subr.mxu0 0.0
  %v632 = vand.u32 %v24, 4294901760
  %v633 = vsub.f32 %v24, %v632
  %v634 = vand.u32 %v633, 4294901760
  %635 = vmatpush1.msra.mxu0 %v634
  %636 = vmatprep.subr.mxu0 0.0
  %v637 = vand.u32 %v25, 4294901760
  %v638 = vsub.f32 %v25, %v637
  %v639 = vand.u32 %v638, 4294901760
  %640 = vmatpush1.msra.mxu0 %v639
  %641 = vmatprep.subr.mxu0 0.0
  %v642 = vand.u32 %v26, 4294901760
  %v643 = vsub.f32 %v26, %v642
  %v644 = vand.u32 %v643, 4294901760
  %645 = vmatpush1.msra.mxu0 %v644
  %646 = vmatprep.subr.mxu0 0.0
  %v647 = vand.u32 %v27, 4294901760
  %v648 = vsub.f32 %v27, %v647
  %v649 = vand.u32 %v648, 4294901760
  %650 = vmatpush1.msra.mxu0 %v649
  %651 = vmatprep.subr.mxu0 0.0
  %v652 = vand.u32 %v28, 4294901760
  %v653 = vsub.f32 %v28, %v652
  %v654 = vand.u32 %v653, 4294901760
  %655 = vmatpush1.msra.mxu0 %v654
  %656 = vmatprep.subr.mxu0 0.0
  %v657 = vand.u32 %v29, 4294901760
  %v658 = vsub.f32 %v29, %v657
  %v659 = vand.u32 %v658, 4294901760
  %660 = vmatpush1.msra.mxu0 %v659
  %661 = vmatprep.subr.mxu0 0.0
  %v662 = vand.u32 %v30, 4294901760
  %v663 = vsub.f32 %v30, %v662
  %v664 = vand.u32 %v663, 4294901760
  %665 = vmatpush1.msra.mxu0 %v664
  %666 = vmatprep.subr.mxu0 0.0
  %667 = vmatpush1.msra.mxu0 0.0
  %668 = vmatprep.subr.mxu0 0.0
  %669 = vmatpush1.msra.mxu0 0.0
  %670 = vmatprep.subr.mxu0 0.0
  %671 = vmatpush1.msra.mxu0 0.0
  %672 = vmatprep.subr.mxu0 0.0
  %673 = vmatpush1.msra.mxu0 0.0
  %674 = vmatprep.subr.mxu0 0.0
  %675 = vmatpush1.msra.mxu0 0.0
  %676 = vmatprep.subr.mxu0 0.0
  %677 = vmatpush1.msra.mxu0 0.0
  %678 = vmatprep.subr.mxu0 0.0
  %679 = vmatpush1.msra.mxu0 0.0
  %680 = vmatprep.subr.mxu0 0.0
  %681 = vmatpush1.msra.mxu0 0.0
  %682 = vmatprep.subr.mxu0 0.0
  %683 = vmatpush1.msra.mxu0 0.0
  %684 = vmatprep.subr.mxu0 0.0
  %685 = vmatpush1.msra.mxu0 0.0
  %686 = vmatprep.subr.mxu0 0.0
  %687 = vmatpush1.msra.mxu0 0.0
  %688 = vmatprep.subr.mxu0 0.0
  %689 = vmatpush1.msra.mxu0 0.0
  %690 = vmatprep.subr.mxu0 0.0
  %691 = vmatpush1.msra.mxu0 0.0
  %692 = vmatprep.subr.mxu0 0.0
  %693 = vmatpush1.msra.mxu0 0.0
  %694 = vmatprep.subr.mxu0 0.0
  %695 = vmatpush1.msra.mxu0 0.0
  %696 = vmatprep.subr.mxu0 0.0
  %697 = vmatpush1.msra.mxu0 0.0
  %698 = vmatprep.mubr.f32.mxu0 0.0
  %v699 = vand.u32 %v143, 4294901760
  %700 = vmatmul.mubr.f32.gmra.mrb[0].mxu0 %v699
  %v701 = vpop.f32.mrb[0].mxu0
  %v702 = vadd.f32 %v583, %v701
  %v703 = vpop.f32.mrb[0].mxu0
  %704 = vdwg.mxu0
  %705 = vmatprep.subr.mxu0 0.0
  %v706 = vand.u32 %v15, 4294901760
  %707 = vmatpush1.msra.mxu0 %v706
  %708 = vmatprep.subr.mxu0 0.0
  %v709 = vand.u32 %v16, 4294901760
  %710 = vmatpush1.msra.mxu0 %v709
  %711 = vmatprep.subr.mxu0 0.0
  %v712 = vand.u32 %v17, 4294901760
  %713 = vmatpush1.msra.mxu0 %v712
  %714 = vmatprep.subr.mxu0 0.0
  %v715 = vand.u32 %v18, 4294901760
  %716 = vmatpush1.msra.mxu0 %v715
  %717 = vmatprep.subr.mxu0 0.0
  %v718 = vand.u32 %v19, 4294901760
  %719 = vmatpush1.msra.mxu0 %v718
  %720 = vmatprep.subr.mxu0 0.0
  %v721 = vand.u32 %v20, 4294901760
  %722 = vmatpush1.msra.mxu0 %v721
  %723 = vmatprep.subr.mxu0 0.0
  %v724 = vand.u32 %v21, 4294901760
  %725 = vmatpush1.msra.mxu0 %v724
  %726 = vmatprep.subr.mxu0 0.0
  %v727 = vand.u32 %v22, 4294901760
  %728 = vmatpush1.msra.mxu0 %v727
  %729 = vmatprep.subr.mxu0 0.0
  %v730 = vand.u32 %v23, 4294901760
  %731 = vmatpush1.msra.mxu0 %v730
  %732 = vmatprep.subr.mxu0 0.0
  %v733 = vand.u32 %v24, 4294901760
  %734 = vmatpush1.msra.mxu0 %v733
  %735 = vmatprep.subr.mxu0 0.0
  %v736 = vand.u32 %v25, 4294901760
  %737 = vmatpush1.msra.mxu0 %v736
  %738 = vmatprep.subr.mxu0 0.0
  %v739 = vand.u32 %v26, 4294901760
  %740 = vmatpush1.msra.mxu0 %v739
  %741 = vmatprep.subr.mxu0 0.0
  %v742 = vand.u32 %v27, 4294901760
  %743 = vmatpush1.msra.mxu0 %v742
  %744 = vmatprep.subr.mxu0 0.0
  %v745 = vand.u32 %v28, 4294901760
  %746 = vmatpush1.msra.mxu0 %v745
  %747 = vmatprep.subr.mxu0 0.0
  %v748 = vand.u32 %v29, 4294901760
  %749 = vmatpush1.msra.mxu0 %v748
  %750 = vmatprep.subr.mxu0 0.0
  %v751 = vand.u32 %v30, 4294901760
  %752 = vmatpush1.msra.mxu0 %v751
  %753 = vmatprep.subr.mxu0 0.0
  %754 = vmatpush1.msra.mxu0 0.0
  %755 = vmatprep.subr.mxu0 0.0
  %756 = vmatpush1.msra.mxu0 0.0
  %757 = vmatprep.subr.mxu0 0.0
  %758 = vmatpush1.msra.mxu0 0.0
  %759 = vmatprep.subr.mxu0 0.0
  %760 = vmatpush1.msra.mxu0 0.0
  %761 = vmatprep.subr.mxu0 0.0
  %762 = vmatpush1.msra.mxu0 0.0
  %763 = vmatprep.subr.mxu0 0.0
  %764 = vmatpush1.msra.mxu0 0.0
  %765 = vmatprep.subr.mxu0 0.0
  %766 = vmatpush1.msra.mxu0 0.0
  %767 = vmatprep.subr.mxu0 0.0
  %768 = vmatpush1.msra.mxu0 0.0
  %769 = vmatprep.subr.mxu0 0.0
  %770 = vmatpush1.msra.mxu0 0.0
  %771 = vmatprep.subr.mxu0 0.0
  %772 = vmatpush1.msra.mxu0 0.0
  %773 = vmatprep.subr.mxu0 0.0
  %774 = vmatpush1.msra.mxu0 0.0
  %775 = vmatprep.subr.mxu0 0.0
  %776 = vmatpush1.msra.mxu0 0.0
  %777 = vmatprep.subr.mxu0 0.0
  %778 = vmatpush1.msra.mxu0 0.0
  %779 = vmatprep.subr.mxu0 0.0
  %780 = vmatpush1.msra.mxu0 0.0
  %781 = vmatprep.subr.mxu0 0.0
  %782 = vmatpush1.msra.mxu0 0.0
  %783 = vmatprep.subr.mxu0 0.0
  %784 = vmatpush1.msra.mxu0 0.0
  %785 = vmatprep.mubr.f32.mxu0 0.0
  %v786 = vand.u32 %v143, 4294901760
  %787 = vmatmul.mubr.f32.gmra.mrb[0].mxu0 %v786
  %v788 = vpop.f32.mrb[0].mxu0
  %v789 = vadd.f32 %v702, %v788
  %v790 = vpop.f32.mrb[0].mxu0
  %791 = vdwg.mxu0
  %792 = vst [vmem:[%s3] sm:$0xff] %v789
  // Predicated region
  $region14: #{encoder_forward.1} parent=0 // pred_check
    _
  $region15: #{encoder_forward.1} parent=0 // pred_check_branch
    %794 = sbr.rel (0) target = $region17
  $region16: #{encoder_forward.1} parent=0 // pred_region
    _
  $region17: #{encoder_forward.1} parent=0 // pred_fallthru
    _
  // Predicated region
  $region18: #{encoder_forward.1} parent=0 // pred_check
    _
  $region19: #{encoder_forward.1} parent=0 // pred_check_branch
    %796 = sbr.rel (0) target = $region21
  $region20: #{encoder_forward.1} parent=0 // pred_region
    _
  $region21: #{encoder_forward.1} parent=0 // pred_fallthru
    _

</llo_original>
